<compile_context>
chip_gen: v7x
topology: tpu7x:2x2x1
jax: 0.10.0
libtpu: 0.0.40
codegen_flags: <defaults>
</compile_context>

<pallas_src>
import functools
import math

import numpy as np

import jax
import jax.numpy as jnp
from jax.experimental import pallas as pl
from jax.experimental.pallas import tpu as pltpu

_LANE = 128


# ----------------------------------------------------------------------------
# Pure-JAX path: tiny-input fallback, <g-row tails, and test reference.
# ----------------------------------------------------------------------------
def _mlp_spec_ln_jax(x, weight, bias, eps, affine):
    xf = x.astype(jnp.float32)
    xf = xf * jax.lax.rsqrt(jnp.mean(xf * xf, axis=-1, keepdims=True) + eps)
    out = xf.astype(x.dtype)                       # type_as(x) BEFORE affine
    if affine:
        out = weight.astype(x.dtype) * out + bias.astype(x.dtype)
    return out


# ----------------------------------------------------------------------------
# Kernel
# ----------------------------------------------------------------------------
def _mlp_spec_ln_kernel(*refs, eps, affine, group):
    """One grid step over a (row_tile, L) slab.

    group == 1 : L == D, plain per-row mean-of-squares (XLU lane reduce).
    group  > 1 : each 128-lane super row packs `group` original rows; the
                 segmented mean-of-squares AND its broadcast back over each
                 segment's lanes is one block-diagonal matmul on the MXU.
    """
    if group > 1:
        if affine:
            x_ref, seg_ref, w_ref, b_ref, o_ref = refs
        else:
            x_ref, seg_ref, o_ref = refs
            w_ref = b_ref = None
    else:
        seg_ref = None
        if affine:
            x_ref, w_ref, b_ref, o_ref = refs
        else:
            x_ref, o_ref = refs
            w_ref = b_ref = None

    xf = x_ref[...].astype(jnp.float32)   # f32 accumulation (HBM-bound: free)

    if group == 1:
        ms = jnp.mean(xf * xf, axis=-1, keepdims=True)           # (rt, 1)
    else:
        # seg_ref[k, l] = 1/D if lanes k, l belong to the same D-wide segment
        # else 0 -> ms[:, l] = mean of squares over lane l's segment.
        # Runs on the otherwise-idle MXU; keeps the VPU free (HBM-bound).
        ms = jnp.dot(xf * xf, seg_ref[...],
                     preferred_element_type=jnp.float32)          # (rt, L)

    inv = jax.lax.rsqrt(ms + eps)
    xn = (xf * inv).astype(o_ref.dtype)   # torch: type_as(x) BEFORE affine
    if affine:
        xn = w_ref[...] * xn + b_ref[...]
    o_ref[...] = xn                       # masked for the partial final block


# ----------------------------------------------------------------------------
# Generation-aware tuning knobs
# ----------------------------------------------------------------------------
def _tpu_generation_params():
    """Return (vmem_limit_bytes, min_grid_steps_for_parallel_axis)."""
    vmem_cap = None
    try:
        vmem_cap = int(getattr(pltpu.get_tpu_info(),
                               "vmem_capacity_bytes", 0)) or None
    except Exception:
        vmem_cap = None
    kind = ""
    try:
        kind = jax.devices()[0].device_kind.lower()
    except Exception:
        kind = ""

    is_v7 = ("v7" in kind) or (vmem_cap is not None
                               and vmem_cap <= 80 * 1024 * 1024)
    big_vmem = (vmem_cap is not None and vmem_cap >= 100 * 1024 * 1024) or \
               any(k in kind for k in ("v4", "v5", "v6"))

    if is_v7:
        # 64 MiB physical per TC, 2 TCs -> keep >= 2 blocks per core and
        # leave headroom below the physical limit.
        return 40 * 1024 * 1024, 4
    if big_vmem:
        # v5e/v6e: 128 MiB physical, single TC (grid is a serial loop).
        return 80 * 1024 * 1024, 2
    # Unknown hardware: conservative.
    return 48 * 1024 * 1024, 2


# ----------------------------------------------------------------------------
# Wrapper
# ----------------------------------------------------------------------------
def mlp_speculator_layernorm(x, weight=None, bias=None, *, eps=1e-6,
                             elementwise_scale_and_shift=True,
                             row_tile=None, use_pallas=None,
                             input_buffers=None):
    """Pallas implementation of MLPSpeculatorLayerNorm.forward.

    x: [..., D]; weight/bias: [D] (required iff elementwise_scale_and_shift).
    use_pallas: None = auto (tiny inputs use plain JAX), True/False to force.
    input_buffers: optional deeper input pipelining (e.g. 3 on v7x if an
        xprof trace shows exposed DMA); default is the standard double buffer.
    """
    orig_shape = x.shape
    D = int(orig_shape[-1])
    rows = int(math.prod(orig_shape[:-1]))
    affine = bool(elementwise_scale_and_shift)
    if affine:
        assert weight is not None and bias is not None
    eps = float(eps)

    # Tiny speculator-sized inputs are launch-overhead bound, not BW bound:
    # skip the standalone pallas_call (ideally the norm is fused into the
    # adjacent GEMM / left to XLA fusion).
    if use_pallas is None:
        use_pallas = x.size * x.dtype.itemsize >= (256 << 10)
    if (not use_pallas) or rows == 0:
        return _mlp_spec_ln_jax(x, weight, bias, eps, affine)

    # --- lane-dense folding: pack g = 128//D rows per 128-lane super row ----
    if D < _LANE and _LANE % D == 0:
        g = _LANE // D
    else:
        g = 1
    L = g * D

    x2d = x.reshape(rows, D)
    rows_main = (rows // g) * g
    if rows_main == 0:                       # fewer than g rows total
        return _mlp_spec_ln_jax(x2d, weight, bias, eps,
                                affine).reshape(orig_shape)
    super_rows = rows_main // g

    # < g leftover rows (only when rows % (128//D) != 0): tiny plain-JAX pass
    # instead of padding / copying the whole array.  Note: the final
    # concatenate still rewrites the output once; the g-aligned case (the
    # common one) has no extra host-side copies at all.
    if rows_main != rows:
        x_tail = x2d[rows_main:]
        x_main = x2d[:rows_main].reshape(super_rows, L)
    else:
        x_tail = None
        x_main = x2d.reshape(super_rows, L)

    # --- dtype- and generation-aware row tile --------------------------------
    itemsize = x.dtype.itemsize
    pack = max(8, 32 // max(1, itemsize))    # sublane pack: 8 f32/16 bf16/32 i8
    vmem_limit, min_grid = _tpu_generation_params()

    if row_tile is not None:
        rt = max(pack, -(-int(row_tile) // pack) * pack)
    else:
        # Budget the whole per-step VMEM working set: 2x input + 2x output
        # double buffers (x dtype) plus ~3 block-sized f32 in-kernel temps.
        per_row_bytes = L * (4 * itemsize + 3 * 4)
        rt = max(pack,
                 (int(vmem_limit * 0.6) // per_row_bytes) // pack * pack)
        # Keep >= min_grid steps so the "parallel" axis can shard across both
        # TensorCores on v7x; min_grid=2 elsewhere (grid is a serial loop).
        if super_rows >= min_grid * pack:
            cap = -(-super_rows // min_grid)
            cap = -(-cap // pack) * pack
            rt = min(rt, cap)
    if rt >= super_rows:
        rt = super_rows                      # single full-extent block
    grid = (-(-super_rows // rt),)           # cdiv; final block may be partial

    # --- specs ---------------------------------------------------------------
    spec_kwargs = {}
    if input_buffers is not None:
        spec_kwargs["pipeline_mode"] = pl.Buffered(int(input_buffers))
    x_spec = pl.BlockSpec((rt, L), lambda i: (i, 0), **spec_kwargs)
    out_spec = pl.BlockSpec((rt, L), lambda i: (i, 0))

    inputs = [x_main]
    in_specs = [x_spec]
    if g > 1:
        lane = np.arange(L)
        seg_mat = jnp.asarray(
            (lane[:, None] // D == lane[None, :] // D).astype(np.float32) / D)
        inputs.append(seg_mat)
        # Same block index every step -> stays resident after a single DMA.
        in_specs.append(pl.BlockSpec((L, L), lambda i: (0, 0)))
    if affine:
        w2d = jnp.tile(weight.astype(x.dtype).reshape(-1), g).reshape(1, L)
        b2d = jnp.tile(bias.astype(x.dtype).reshape(-1), g).reshape(1, L)
        wb_spec = pl.BlockSpec((1, L), lambda i: (0, 0))
        inputs += [w2d, b2d]
        in_specs += [wb_spec, wb_spec]

    kernel = functools.partial(_mlp_spec_ln_kernel, eps=eps, affine=affine,
                               group=g)

    out_main = pl.pallas_call(
        kernel,
        out_shape=jax.ShapeDtypeStruct((super_rows, L), x.dtype),
        grid_spec=pltpu.PrefetchScalarGridSpec(
            num_scalar_prefetch=0,
            grid=grid,
            in_specs=in_specs,
            out_specs=out_spec,
        ),
        compiler_params=pltpu.CompilerParams(
            dimension_semantics=("parallel",),
            vmem_limit_bytes=vmem_limit,
        ),
    )(*inputs)

    out = out_main.reshape(rows_main, D)
    if x_tail is not None:
        out = jnp.concatenate(
            [out, _mlp_spec_ln_jax(x_tail, weight, bias, eps, affine)], axis=0)
    return out.reshape(orig_shape)


# ----------------------------------------------------------------------------
# Tests
# ----------------------------------------------------------------------------
if __name__ == "__main__":
    eps = 1e-6
    key = jax.random.PRNGKey(0)
    kx, kw, kb = jax.random.split(key, 3)

    # 1) Module-sized shapes: batch=2, seq=8, hidden=32 (g=4 lane folding).
    x = jax.random.normal(kx, (2, 8, 32), dtype=jnp.float32)
    w = 1.0 + 0.1 * jax.random.normal(kw, (32,), dtype=jnp.float32)
    b = 0.05 * jax.random.normal(kb, (32,), dtype=jnp.float32)
    out = jax.block_until_ready(
        mlp_speculator_layernorm(x, w, b, eps=eps, use_pallas=True))
    ref = _mlp_spec_ln_jax(x, w, b, eps, True)
    assert out.shape == x.shape and out.dtype == x.dtype
    assert jnp.allclose(out, ref, atol=1e-5, rtol=1e-4), "affine mismatch"

    # 2) No-affine path.
    out2 = jax.block_until_ready(
        mlp_speculator_layernorm(x, eps=eps, elementwise_scale_and_shift=False,
                                 use_pallas=True))
    ref2 = _mlp_spec_ln_jax(x, None, None, eps, False)
    assert jnp.allclose(out2, ref2, atol=1e-5, rtol=1e-4), "no-affine mismatch"

    # 3) g == 1 (D=128), multi-step grid with a partial final block (21 rows).
    x3 = jax.random.normal(kx, (3, 7, 128), dtype=jnp.float32)
    w3 = 1.0 + 0.1 * jax.random.normal(kw, (128,), dtype=jnp.float32)
    b3 = 0.05 * jax.random.normal(kb, (128,), dtype=jnp.float32)
    out3 = jax.block_until_ready(
        mlp_speculator_layernorm(x3, w3, b3, eps=eps, row_tile=8,
                                 use_pallas=True))
    ref3 = _mlp_spec_ln_jax(x3, w3, b3, eps, True)
    assert jnp.allclose(out3, ref3, atol=1e-5, rtol=1e-4), "D=128 mismatch"

    # 4) Folded path, partial final block + <g-row JAX tail (50 rows, D=32).
    x4 = jax.random.normal(kb, (5, 10, 32), dtype=jnp.float32)
    out4 = jax.block_until_ready(
        mlp_speculator_layernorm(x4, w, b, eps=eps, row_tile=8,
                                 use_pallas=True))
    ref4 = _mlp_spec_ln_jax(x4, w, b, eps, True)
    assert jnp.allclose(out4, ref4, atol=1e-5, rtol=1e-4), "tail mismatch"

    # 5) bf16 + D=64 (g=2): dtype-aware tiling / sublane packing.
    x5 = jax.random.normal(kx, (4, 64, 64), dtype=jnp.float32).astype(jnp.bfloat16)
    w5 = (1.0 + 0.1 * jax.random.normal(kw, (64,), jnp.float32)).astype(jnp.bfloat16)
    b5 = (0.05 * jax.random.normal(kb, (64,), jnp.float32)).astype(jnp.bfloat16)
    out5 = jax.block_until_ready(
        mlp_speculator_layernorm(x5, w5, b5, eps=eps, use_pallas=True))
    ref5 = _mlp_spec_ln_jax(x5, w5, b5, eps, True)
    assert out5.dtype == jnp.bfloat16
    assert jnp.allclose(out5.astype(jnp.float32), ref5.astype(jnp.float32),
                        atol=2e-2, rtol=2e-2), "bf16 mismatch"

    # 6) D=8 (g=16): gate dropped; 12-row tail goes through the JAX path.
    x6 = jax.random.normal(kw, (6, 10, 8), dtype=jnp.float32)
    w6 = 1.0 + 0.1 * jax.random.normal(kw, (8,), dtype=jnp.float32)
    b6 = 0.05 * jax.random.normal(kb, (8,), dtype=jnp.float32)
    out6 = jax.block_until_ready(
        mlp_speculator_layernorm(x6, w6, b6, eps=eps, use_pallas=True))
    ref6 = _mlp_spec_ln_jax(x6, w6, b6, eps, True)
    assert jnp.allclose(out6, ref6, atol=1e-5, rtol=1e-4), "D=8 mismatch"

    # 7) Auto-dispatch: tiny speculator-sized input skips pallas_call.
    out7 = jax.block_until_ready(mlp_speculator_layernorm(x, w, b, eps=eps))
    assert jnp.allclose(out7, ref, atol=1e-5, rtol=1e-4), "dispatch mismatch"

    print("KERNEL_OK")
</pallas_src>

<mosaic_0001>
module attributes {stable_mosaic.version = 11 : i64} {
  func.func @_mlp_spec_ln_kernel(%arg0: i32, %arg1: memref<4x128xf32, #tpu.memory_space<vmem>>, %arg2: memref<128x128xf32, #tpu.memory_space<vmem>>, %arg3: memref<1x128xf32, #tpu.memory_space<vmem>>, %arg4: memref<1x128xf32, #tpu.memory_space<vmem>>, %arg5: memref<4x128xf32, #tpu.memory_space<vmem>>) attributes {dimension_semantics = [#tpu.dimension_semantics<parallel>], iteration_bounds = array<i64: 1>, scalar_prefetch = 0 : i64, scratch_operands = 0 : i64, tpu.core_type = #tpu.core_type<tc>, window_params = [{transform_indices = @transform_0, window_bounds = array<i64: 4, 128>}, {pipeline_mode = #tpu.pipeline_mode<synchronous>, transform_indices = @transform_1, window_bounds = array<i64: 128, 128>}, {pipeline_mode = #tpu.pipeline_mode<synchronous>, transform_indices = @transform_2, window_bounds = array<i64: 1, 128>}, {pipeline_mode = #tpu.pipeline_mode<synchronous>, transform_indices = @transform_3, window_bounds = array<i64: 1, 128>}, {transform_indices = @transform_4, window_bounds = array<i64: 4, 128>}]} {
    %c0 = arith.constant 0 : index
    %c0_0 = arith.constant 0 : index
    %0 = vector.load %arg1[%c0, %c0_0] : memref<4x128xf32, #tpu.memory_space<vmem>>, vector<4x128xf32>
    %1 = arith.mulf %0, %0 : vector<4x128xf32>
    %c0_1 = arith.constant 0 : index
    %c0_2 = arith.constant 0 : index
    %2 = vector.load %arg2[%c0_1, %c0_2] : memref<128x128xf32, #tpu.memory_space<vmem>>, vector<128x128xf32>
    %cst = arith.constant dense<0.000000e+00> : vector<4x128xf32>
    %3 = tpu.matmul %1, %2, %cst {dimension_numbers = #tpu.dot_dimension_numbers<[1], [0], [0], [1], [0, 0, 1, 1], [], []>} : vector<4x128xf32>, vector<128x128xf32>, vector<4x128xf32> -> vector<4x128xf32>
    %cst_3 = arith.constant 9.99999997E-7 : f32
    %4 = vector.broadcast %cst_3 : f32 to vector<4x128xf32>
    %5 = arith.addf %3, %4 : vector<4x128xf32>
    %6 = math.rsqrt %5 : vector<4x128xf32>
    %7 = arith.mulf %0, %6 : vector<4x128xf32>
    %c0_4 = arith.constant 0 : index
    %c0_5 = arith.constant 0 : index
    %8 = vector.load %arg3[%c0_4, %c0_5] : memref<1x128xf32, #tpu.memory_space<vmem>>, vector<1x128xf32>
    %9 = vector.broadcast %8 : vector<1x128xf32> to vector<4x128xf32>
    %10 = arith.mulf %9, %7 : vector<4x128xf32>
    %c0_6 = arith.constant 0 : index
    %c0_7 = arith.constant 0 : index
    %11 = vector.load %arg4[%c0_6, %c0_7] : memref<1x128xf32, #tpu.memory_space<vmem>>, vector<1x128xf32>
    %12 = vector.broadcast %11 : vector<1x128xf32> to vector<4x128xf32>
    %13 = arith.addf %10, %12 : vector<4x128xf32>
    %c0_8 = arith.constant 0 : index
    %c0_9 = arith.constant 0 : index
    %14 = vector.load %arg5[%c0_8, %c0_9] : memref<4x128xf32, #tpu.memory_space<vmem>>, vector<4x128xf32>
    tpu.vector_store %arg5[%c0_8, %c0_9], %13 {strides = array<i32>} : memref<4x128xf32, #tpu.memory_space<vmem>>, vector<4x128xf32>,
    return
  }
  func.func @transform_0(%arg0: i32) -> (i32, i32) {
    %c0_i32 = arith.constant 0 : i32
    %c0_i32_0 = arith.constant 0 : i32
    return %arg0, %c0_i32 : i32, i32
  }
  func.func @transform_1(%arg0: i32) -> (i32, i32) {
    %c0_i32 = arith.constant 0 : i32
    %c0_i32_0 = arith.constant 0 : i32
    %c0_i32_1 = arith.constant 0 : i32
    return %c0_i32, %c0_i32_0 : i32, i32
  }
  func.func @transform_2(%arg0: i32) -> (i32, i32) {
    %c0_i32 = arith.constant 0 : i32
    %c0_i32_0 = arith.constant 0 : i32
    %c0_i32_1 = arith.constant 0 : i32
    return %c0_i32, %c0_i32_0 : i32, i32
  }
  func.func @transform_3(%arg0: i32) -> (i32, i32) {
    %c0_i32 = arith.constant 0 : i32
    %c0_i32_0 = arith.constant 0 : i32
    %c0_i32_1 = arith.constant 0 : i32
    return %c0_i32, %c0_i32_0 : i32, i32
  }
  func.func @transform_4(%arg0: i32) -> (i32, i32) {
    %c0_i32 = arith.constant 0 : i32
    %c0_i32_0 = arith.constant 0 : i32
    return %arg0, %c0_i32 : i32, i32
  }
}

</mosaic_0001>

<llo_original>
// kernel: tpu_custom_call.1
$region0: #{tpu_custom_call.1}
  #allocation0 [shape = 'u32[]', space=smem, size = 0x4, offset = 0x4, fixed_abs, tag = 'smem constant byte address 0x4 - core index']
  #allocation1 [shape = 'u32[144,128]{1,0:T(1,128)}', space=vmem, size = 0x12000, scoped, tag = 'internal scratch']
  %s0 = inlined_call_operand.hbm [shape: f32[4,128], index: 0, kind: input, shape index: {}]
  %s1 = inlined_call_operand.hbm [shape: f32[128,128], index: 1, kind: input, shape index: {}]
  %s2 = inlined_call_operand.vmem [shape: f32[1,128], index: 2, kind: input, shape index: {}]
  %s3 = inlined_call_operand.vmem [shape: f32[1,128], index: 3, kind: input, shape index: {}]
  %s4 = inlined_call_operand.hbm [shape: f32[4,128], index: 4, kind: output, shape index: {}]
  %s5 = sld [smem:[#allocation0]]
  $region34: #{tpu_custom_call.1} parent=0
    _
  %s7 = ssub.s32 1, %s5
  %s8 = scalar_select 0, %s7, %s5
  $region1: #{tpu_custom_call.1} parent=0
    #allocation2 [shape = 'u8[2048]{0}', space=vmem, size = 0x800, scoped, tag = 'input window, operand 0, single buffered']
    #allocation3 [shape = 's32[1]{0}', space=sflag, size = 0x4, scoped, tag = 'scoped memory for tpu_custom_call.1']
    #allocation4 [shape = 's32[1]{0}', space=sflag, size = 0x4, scoped, tag = 'scoped memory for tpu_custom_call.1']
    #allocation5 [shape = 'u8[65536]{0}', space=vmem, size = 0x10000, scoped, tag = 'input window, operand 1, single buffered']
    #allocation6 [shape = 's32[1]{0}', space=sflag, size = 0x4, scoped, tag = 'scoped memory for tpu_custom_call.1']
    #allocation7 [shape = 'u8[2048]{0}', space=vmem, size = 0x800, scoped, tag = 'output window, operand 0, single buffered']
    %9 = vsyncpa [#allocation3], 0
    %10 = vsyncpa [#allocation6], 0
    %11 = vsyncpa [#allocation4], 0
    // Predicated region
    $region2: #{tpu_custom_call.1} parent=1 // pred_check
      _
    $region3: #{tpu_custom_call.1} parent=1 // pred_check_branch
      %13 = sbr.rel (0) target = $region5
    $region4: #{tpu_custom_call.1} parent=1 // pred_region
      %s15 = ssub.s32 64, 64
      %16 = vsyncadd [#allocation3], %s15
      %s18 = sshll.u32 [#allocation2], 4
      %s19 = int_to_ptr.vmem [resolvable:$true] %s18
      %21 = dma.hbm_to_vmem [thread:$0]  %s0, 64, %s19, [#allocation3]
    $region5: #{tpu_custom_call.1} parent=1 // pred_fallthru
      _
    // Predicated region
    $region6: #{tpu_custom_call.1} parent=1 // pred_check
      _
    $region7: #{tpu_custom_call.1} parent=1 // pred_check_branch
      %23 = sbr.rel (0) target = $region9
    $region8: #{tpu_custom_call.1} parent=1 // pred_region
      %s25 = ssub.s32 2048, 2048
      %26 = vsyncadd [#allocation6], %s25
      %s27 = sshll.u32 [#allocation5], 4
      %s28 = int_to_ptr.vmem [resolvable:$true] %s27
      %33 = dma.hbm_to_vmem [thread:$0]  %s1, 2048, %s28, [#allocation6], 128, 128, 8
    $region9: #{tpu_custom_call.1} parent=1 // pred_fallthru
      _
    // Predicated region
    $region10: #{tpu_custom_call.1} parent=1 // pred_check
      _
    $region11: #{tpu_custom_call.1} parent=1 // pred_check_branch
      %35 = sbr.rel (0) target = $region13
    $region12: #{tpu_custom_call.1} parent=1 // pred_region
      _
    $region13: #{tpu_custom_call.1} parent=1 // pred_fallthru
      _
    // Predicated region
    $region14: #{tpu_custom_call.1} parent=1 // pred_check
      _
    $region15: #{tpu_custom_call.1} parent=1 // pred_check_branch
      %37 = sbr.rel (0) target = $region17
    $region16: #{tpu_custom_call.1} parent=1 // pred_region
      _
    $region17: #{tpu_custom_call.1} parent=1 // pred_fallthru
      _
    // Predicated region
    $region18: #{tpu_custom_call.1} parent=1 // pred_check
      _
    $region19: #{tpu_custom_call.1} parent=1 // pred_check_branch
      %39 = sbr.rel (0) target = $region21
    $region20: #{tpu_custom_call.1} parent=1 // pred_region
      %40 = dma.done [#allocation3], 64
    $region21: #{tpu_custom_call.1} parent=1 // pred_fallthru
      _
    // Predicated region
    $region22: #{tpu_custom_call.1} parent=1 // pred_check
      _
    $region23: #{tpu_custom_call.1} parent=1 // pred_check_branch
      %42 = sbr.rel (0) target = $region25
    $region24: #{tpu_custom_call.1} parent=1 // pred_region
      %43 = dma.done [#allocation6], 2048
    $region25: #{tpu_custom_call.1} parent=1 // pred_fallthru
      _
    %v44 = vld [vmem:[#allocation2] sm:$0xf]
    %v45 = vmul.f32 %v44, %v44
    %v46 = vld [vmem:[#allocation5] sm:$0xff]
    %v47 = vld [vmem:[#allocation5 + $0x8] sm:$0xff]
    %v48 = vld [vmem:[#allocation5 + $0x10] sm:$0xff]
    %v49 = vld [vmem:[#allocation5 + $0x18] sm:$0xff]
    %v50 = vld [vmem:[#allocation5 + $0x20] sm:$0xff]
    %v51 = vld [vmem:[#allocation5 + $0x28] sm:$0xff]
    %v52 = vld [vmem:[#allocation5 + $0x30] sm:$0xff]
    %v53 = vld [vmem:[#allocation5 + $0x38] sm:$0xff]
    %v54 = vld [vmem:[#allocation5 + $0x40] sm:$0xff]
    %v55 = vld [vmem:[#allocation5 + $0x48] sm:$0xff]
    %v56 = vld [vmem:[#allocation5 + $0x50] sm:$0xff]
    %v57 = vld [vmem:[#allocation5 + $0x58] sm:$0xff]
    %v58 = vld [vmem:[#allocation5 + $0x60] sm:$0xff]
    %v59 = vld [vmem:[#allocation5 + $0x68] sm:$0xff]
    %v60 = vld [vmem:[#allocation5 + $0x70] sm:$0xff]
    %v61 = vld [vmem:[#allocation5 + $0x78] sm:$0xff]
    %62 = vmatprep.subr.mxu0 0.0
    %63 = vmatpush1.msra.mxu0 %v46
    %64 = vmatprep.subr.mxu0 0.0
    %65 = vmatpush1.msra.mxu0 %v47
    %66 = vmatprep.subr.mxu0 0.0
    %67 = vmatpush1.msra.mxu0 %v48
    %68 = vmatprep.subr.mxu0 0.0
    %69 = vmatpush1.msra.mxu0 %v49
    %70 = vmatprep.subr.mxu0 0.0
    %71 = vmatpush1.msra.mxu0 %v50
    %72 = vmatprep.subr.mxu0 0.0
    %73 = vmatpush1.msra.mxu0 %v51
    %74 = vmatprep.subr.mxu0 0.0
    %75 = vmatpush1.msra.mxu0 %v52
    %76 = vmatprep.subr.mxu0 0.0
    %77 = vmatpush1.msra.mxu0 %v53
    %78 = vmatprep.subr.mxu0 0.0
    %79 = vmatpush1.msra.mxu0 %v54
    %80 = vmatprep.subr.mxu0 0.0
    %81 = vmatpush1.msra.mxu0 %v55
    %82 = vmatprep.subr.mxu0 0.0
    %83 = vmatpush1.msra.mxu0 %v56
    %84 = vmatprep.subr.mxu0 0.0
    %85 = vmatpush1.msra.mxu0 %v57
    %86 = vmatprep.subr.mxu0 0.0
    %87 = vmatpush1.msra.mxu0 %v58
    %88 = vmatprep.subr.mxu0 0.0
    %89 = vmatpush1.msra.mxu0 %v59
    %90 = vmatprep.subr.mxu0 0.0
    %91 = vmatpush1.msra.mxu0 %v60
    %92 = vmatprep.subr.mxu0 0.0
    %93 = vmatpush1.msra.mxu0 %v61
    %94 = vmatprep.subr.mxu0 0.0
    %95 = vmatpush1.msra.mxu0 0.0
    %96 = vmatprep.subr.mxu0 0.0
    %97 = vmatpush1.msra.mxu0 0.0
    %98 = vmatprep.subr.mxu0 0.0
    %99 = vmatpush1.msra.mxu0 0.0
    %100 = vmatprep.subr.mxu0 0.0
    %101 = vmatpush1.msra.mxu0 0.0
    %102 = vmatprep.subr.mxu0 0.0
    %103 = vmatpush1.msra.mxu0 0.0
    %104 = vmatprep.subr.mxu0 0.0
    %105 = vmatpush1.msra.mxu0 0.0
    %106 = vmatprep.subr.mxu0 0.0
    %107 = vmatpush1.msra.mxu0 0.0
    %108 = vmatprep.subr.mxu0 0.0
    %109 = vmatpush1.msra.mxu0 0.0
    %110 = vmatprep.subr.mxu0 0.0
    %111 = vmatpush1.msra.mxu0 0.0
    %112 = vmatprep.subr.mxu0 0.0
    %113 = vmatpush1.msra.mxu0 0.0
    %114 = vmatprep.subr.mxu0 0.0
    %115 = vmatpush1.msra.mxu0 0.0
    %116 = vmatprep.subr.mxu0 0.0
    %117 = vmatpush1.msra.mxu0 0.0
    %118 = vmatprep.subr.mxu0 0.0
    %119 = vmatpush1.msra.mxu0 0.0
    %120 = vmatprep.subr.mxu0 0.0
    %121 = vmatpush1.msra.mxu0 0.0
    %122 = vmatprep.subr.mxu0 0.0
    %123 = vmatpush1.msra.mxu0 0.0
    %124 = vmatprep.subr.mxu0 0.0
    %125 = vmatpush1.msra.mxu0 0.0
    %126 = vmatprep.mubr.f32.mxu0 0.0
    %127 = vmatmul.mubr.f32.gmra.mrb[0].mxu0 %v45
    %v128 = vpop.f32.mrb[0].mxu0
    %v129 = vadd.f32 1e-06, %v128
    %v130 = vpop.f32.mrb[0].mxu0
    %131 = vdwg.mxu0
    %v132 = vrsqrt.pop %v129
    %v133 = vmul.f32 %v44, %v132
    %v134 = vld [vmem:[%s2] sm:$0x1]
    %v136 = vlaneseq
    %v137 = vshrl.u32 %v136, 7
    %v138 = vsub.s32 0, %v137
    %v139 = vrot.slane %v134, %v138
    %v141 = vmul.f32 %v139, %v133
    %v142 = vld [vmem:[%s3] sm:$0x1]
    %v144 = vlaneseq
    %v145 = vshrl.u32 %v144, 7
    %v146 = vsub.s32 0, %v145
    %v147 = vrot.slane %v142, %v146
    %v149 = vadd.f32 %v141, %v147
    %150 = vst [vmem:[#allocation7] sm:$0xf] %v149
    // Predicated region
    $region26: #{tpu_custom_call.1} parent=1 // pred_check
      _
    $region27: #{tpu_custom_call.1} parent=1 // pred_check_branch
      %152 = sbr.rel (0) target = $region29
    $region28: #{tpu_custom_call.1} parent=1 // pred_region
      %s154 = ssub.s32 64, 64
      %155 = vsyncadd [#allocation4], %s154
      %s157 = sshll.u32 [#allocation7], 4
      %s158 = int_to_ptr.vmem [resolvable:$true] %s157
      %160 = dma.vmem_to_hbm [thread:$0]  %s158, 64, %s4, [#allocation4]
    $region29: #{tpu_custom_call.1} parent=1 // pred_fallthru
      _
    // Predicated region
    $region30: #{tpu_custom_call.1} parent=1 // pred_check
      _
    $region31: #{tpu_custom_call.1} parent=1 // pred_check_branch
      %162 = sbr.rel (0) target = $region33
    $region32: #{tpu_custom_call.1} parent=1 // pred_region
      %163 = dma.done [#allocation4], 64
    $region33: #{tpu_custom_call.1} parent=1 // pred_fallthru
      _
    %164 = vsyncpa [#allocation3], 1
    %165 = vsyncpa [#allocation6], 1
    %166 = vsyncpa [#allocation4], 1

</llo_original>
